<compile_context>
chip_gen: v7x
topology: tpu7x:2x2x1
jax: 0.10.0
libtpu: 0.0.40
codegen_flags: <defaults>
</compile_context>

<pallas_src>
import jax
import jax.numpy as jnp
from jax import lax
from jax.experimental import pallas as pl
from jax.experimental.pallas import tpu as pltpu

KH = KW = 3  # kernel_size=3, stride=1, padding=0, dilation=1, groups=1


def _round_up(v, m):
    return (v + m - 1) // m * m


def _make_kernel(c, w_img, l_cols):
    """Fused 3x3 conv + BatchNorm(eval) + ReLU for one batch element."""

    def kernel(x_ref, w_ref, shift_ref, o_ref, patch_ref):
        # x_ref:     (1, C, F)         bf16, flattened H*W spatial, zero-padded to F
        # w_ref:     (Cout_pad, 9*C)   bf16, BN scale folded in, K order = (kh, kw, c)
        # shift_ref: (Cout_pad, 1)     f32, folded BN shift (beta - mean*scale)
        # o_ref:     (1, Cout_pad, L)  lane-dense, channel-major output slab
        # patch_ref: (9*C, L)          bf16 VMEM scratch (im2col slab)
        x = x_ref[0]                                            # (C, F) bf16
        for kh in range(KH):
            for kw in range(KW):
                t = kh * KW + kw
                off = kh * w_img + kw
                # Static lane-shifted slice of the flat spatial axis.  If a
                # bundle dump ever shows a full relayout copy here, switch to
                # pltpu.roll(x, -off, axis=1)[:, :l_cols] (XLU slot, free
                # under the MXU work).
                patch_ref[t * c:(t + 1) * c, :] = x[:, off:off + l_cols]

        # Single fused matmul: K = 9*C, accumulation stays in the MXU.
        acc = jnp.dot(w_ref[...], patch_ref[...],
                      preferred_element_type=jnp.float32)       # (Cout_pad, L) f32
        acc = acc + shift_ref[...]                              # folded BN shift
        o_ref[0] = jnp.maximum(acc, 0.0).astype(o_ref.dtype)    # ReLU (f32 VPU)

    return kernel


@jax.jit
def basic_conv(x_nchw, w_oihw, gamma, beta, run_mean, run_var, eps=1e-5):
    """BasicConv forward: Conv2d(3x3, s=1, p=0, bias=False) -> BN(eval) -> ReLU.

    x_nchw: (N, C, H, W) f32; w_oihw: (Cout, C, KH, KW).
    Returns (N, Cout, H-2, W-2) f32 (NCHW, matching the PyTorch module).
    """
    n, c, h, w = x_nchw.shape
    cout = w_oihw.shape[0]
    ho, wo = h - (KH - 1), w - (KW - 1)

    cout_pad = _round_up(cout, 8)                    # sublane-aligned, small-Cout path
    l_cols = _round_up(ho * w, 128)                  # lane-dense output columns
    f_flat = _round_up((KH - 1) * w + (KW - 1) + l_cols, 128)

    # TODO(synk): eval-mode BN only (running stats); PyTorch BatchNorm2d defaults
    # to train mode (batch statistics + running-stat/momentum updates).
    scale = gamma * lax.rsqrt(run_var + eps)         # (Cout,)
    shift = beta - run_mean * scale                  # (Cout,)

    # Fold BN scale into the conv weights; (O,I,KH,KW) -> (O, KH*KW*I) with the
    # K axis ordered (kh, kw, c) to match the in-kernel im2col slab; pad
    # O -> Cout_pad with zero rows; bf16 MXU operand (f32 accumulation).
    wf = jnp.transpose(w_oihw, (0, 2, 3, 1)).reshape(cout, KH * KW * c)
    wf = wf * scale[:, None]
    wf = jnp.pad(wf, ((0, cout_pad - cout), (0, 0))).astype(jnp.bfloat16)
    shift_p = jnp.pad(shift, (0, cout_pad - cout)).reshape(cout_pad, 1)
    shift_p = shift_p.astype(jnp.float32)

    # NCHW is consumed directly (channel-major); flatten H*W onto the lane axis,
    # zero-pad, and cast to bf16 at the boundary so the DMA moves half the bytes.
    x_flat = x_nchw.reshape(n, c, h * w)
    x_flat = jnp.pad(x_flat, ((0, 0), (0, 0), (0, f_flat - h * w)))
    x_flat = x_flat.astype(jnp.bfloat16)

    kernel = _make_kernel(c, w, l_cols)

    # TODO(synk): for realistic H/W/C(out) add an Ho row-block grid axis with a
    # (KH-1)*W halo (pl.Element offsets) and a Cout-block axis, sized against
    # v7x's 64 MiB VMEM; at these toy sizes each step's blocks total <40 KiB.
    out = pl.pallas_call(
        kernel,
        out_shape=jax.ShapeDtypeStruct((n, cout_pad, l_cols), x_nchw.dtype),
        grid=(n,),
        in_specs=[
            pl.BlockSpec((1, c, f_flat), lambda i: (i, 0, 0)),
            pl.BlockSpec((cout_pad, KH * KW * c), lambda i: (0, 0)),
            pl.BlockSpec((cout_pad, 1), lambda i: (0, 0)),
        ],
        out_specs=pl.BlockSpec((1, cout_pad, l_cols), lambda i: (i, 0, 0)),
        scratch_shapes=[pltpu.VMEM((KH * KW * c, l_cols), jnp.bfloat16)],
        compiler_params=pltpu.CompilerParams(
            dimension_semantics=("parallel",),       # N>=2 shards over v7x's 2 TCs
            vmem_limit_bytes=32 * 1024 * 1024,
        ),
    )(x_flat, wf, shift_p)

    # Valid outputs are columns j = r*W + w_col with w_col < Wo; wrap/pad
    # columns and padded Cout rows are sliced off here.  The slab is already
    # channel-major, so no NCHW transpose is needed.
    out = out[:, :cout, :ho * w].reshape(n, cout, ho, w)[:, :, :, :wo]
    return out


if __name__ == "__main__":
    key = jax.random.PRNGKey(0)
    N, C, H, W, COUT = 2, 4, 16, 16, 8

    k1, k2, k3, k4, k5, k6 = jax.random.split(key, 6)
    x = jax.random.normal(k1, (N, C, H, W), jnp.float32)
    w = jax.random.normal(k2, (COUT, C, KH, KW), jnp.float32) * 0.1  # bias=False
    gamma = 1.0 + 0.1 * jax.random.normal(k3, (COUT,), jnp.float32)
    beta = 0.1 * jax.random.normal(k4, (COUT,), jnp.float32)
    run_mean = 0.1 * jax.random.normal(k5, (COUT,), jnp.float32)
    run_var = 1.0 + 0.1 * jnp.abs(jax.random.normal(k6, (COUT,), jnp.float32))

    out = basic_conv(x, w, gamma, beta, run_mean, run_var)
    jax.block_until_ready(out)
    assert out.shape == (N, COUT, H - 2, W - 2), out.shape
    assert bool(jnp.all(out >= 0.0))

    # Pure-JAX reference (eval-mode BN); loose tolerance because the kernel's
    # MXU operands are bf16 (deliberate trade, f32 accumulation kept).
    conv = lax.conv_general_dilated(
        x, w, window_strides=(1, 1), padding="VALID",
        dimension_numbers=("NCHW", "OIHW", "NCHW"))
    ref_scale = gamma * lax.rsqrt(run_var + 1e-5)
    ref = jnp.maximum(
        conv * ref_scale[None, :, None, None]
        + (beta - run_mean * ref_scale)[None, :, None, None], 0.0)
    max_err = float(jnp.max(jnp.abs(out - ref)))
    assert max_err < 5e-2, max_err

    print("KERNEL_OK")
</pallas_src>

<mosaic_0001>
module attributes {stable_mosaic.version = 11 : i64} {
  func.func @kernel(%arg0: i32, %arg1: memref<1x4x384xbf16, #tpu.memory_space<vmem>>, %arg2: memref<8x36xbf16, #tpu.memory_space<vmem>>, %arg3: memref<8x1xf32, #tpu.memory_space<vmem>>, %arg4: memref<1x8x256xf32, #tpu.memory_space<vmem>>, %arg5: memref<36x256xbf16, #tpu.memory_space<vmem>>) attributes {dimension_semantics = [#tpu.dimension_semantics<parallel>], iteration_bounds = array<i64: 2>, scalar_prefetch = 0 : i64, scratch_operands = 1 : i64, tpu.core_type = #tpu.core_type<tc>, window_params = [{transform_indices = @transform_0, window_bounds = array<i64: 1, 4, 384>}, {pipeline_mode = #tpu.pipeline_mode<synchronous>, transform_indices = @transform_1, window_bounds = array<i64: 8, 36>}, {pipeline_mode = #tpu.pipeline_mode<synchronous>, transform_indices = @transform_2, window_bounds = array<i64: 8, 1>}, {transform_indices = @transform_3, window_bounds = array<i64: 1, 8, 256>}]} {
    %c0 = arith.constant 0 : index
    %c0_0 = arith.constant 0 : index
    %c0_1 = arith.constant 0 : index
    %0 = vector.load %arg1[%c0, %c0_0, %c0_1] : memref<1x4x384xbf16, #tpu.memory_space<vmem>>, vector<1x4x384xbf16>
    %1 = vector.shape_cast %0 : vector<1x4x384xbf16> to vector<4x384xbf16>
    %2 = vector.extract_strided_slice %1 {offsets = [0, 0], sizes = [4, 256], strides = [1, 1]} : vector<4x384xbf16> to vector<4x256xbf16>
    %c0_2 = arith.constant 0 : index
    %c0_3 = arith.constant 0 : index
    %3 = vector.load %arg5[%c0_2, %c0_3] : memref<36x256xbf16, #tpu.memory_space<vmem>>, vector<4x256xbf16>
    tpu.vector_store %arg5[%c0_2, %c0_3], %2 {strides = array<i32>} : memref<36x256xbf16, #tpu.memory_space<vmem>>, vector<4x256xbf16>,
    %4 = vector.extract_strided_slice %1 {offsets = [0, 1], sizes = [4, 256], strides = [1, 1]} : vector<4x384xbf16> to vector<4x256xbf16>
    %c4 = arith.constant 4 : index
    %c0_4 = arith.constant 0 : index
    %5 = vector.load %arg5[%c4, %c0_4] : memref<36x256xbf16, #tpu.memory_space<vmem>>, vector<4x256xbf16>
    tpu.vector_store %arg5[%c4, %c0_4], %4 {strides = array<i32>} : memref<36x256xbf16, #tpu.memory_space<vmem>>, vector<4x256xbf16>,
    %6 = vector.extract_strided_slice %1 {offsets = [0, 2], sizes = [4, 256], strides = [1, 1]} : vector<4x384xbf16> to vector<4x256xbf16>
    %c8 = arith.constant 8 : index
    %c0_5 = arith.constant 0 : index
    %7 = vector.load %arg5[%c8, %c0_5] : memref<36x256xbf16, #tpu.memory_space<vmem>>, vector<4x256xbf16>
    tpu.vector_store %arg5[%c8, %c0_5], %6 {strides = array<i32>} : memref<36x256xbf16, #tpu.memory_space<vmem>>, vector<4x256xbf16>,
    %8 = vector.extract_strided_slice %1 {offsets = [0, 16], sizes = [4, 256], strides = [1, 1]} : vector<4x384xbf16> to vector<4x256xbf16>
    %c12 = arith.constant 12 : index
    %c0_6 = arith.constant 0 : index
    %9 = vector.load %arg5[%c12, %c0_6] : memref<36x256xbf16, #tpu.memory_space<vmem>>, vector<4x256xbf16>
    tpu.vector_store %arg5[%c12, %c0_6], %8 {strides = array<i32>} : memref<36x256xbf16, #tpu.memory_space<vmem>>, vector<4x256xbf16>,
    %10 = vector.extract_strided_slice %1 {offsets = [0, 17], sizes = [4, 256], strides = [1, 1]} : vector<4x384xbf16> to vector<4x256xbf16>
    %c16 = arith.constant 16 : index
    %c0_7 = arith.constant 0 : index
    %11 = vector.load %arg5[%c16, %c0_7] : memref<36x256xbf16, #tpu.memory_space<vmem>>, vector<4x256xbf16>
    tpu.vector_store %arg5[%c16, %c0_7], %10 {strides = array<i32>} : memref<36x256xbf16, #tpu.memory_space<vmem>>, vector<4x256xbf16>,
    %12 = vector.extract_strided_slice %1 {offsets = [0, 18], sizes = [4, 256], strides = [1, 1]} : vector<4x384xbf16> to vector<4x256xbf16>
    %c20 = arith.constant 20 : index
    %c0_8 = arith.constant 0 : index
    %13 = vector.load %arg5[%c20, %c0_8] : memref<36x256xbf16, #tpu.memory_space<vmem>>, vector<4x256xbf16>
    tpu.vector_store %arg5[%c20, %c0_8], %12 {strides = array<i32>} : memref<36x256xbf16, #tpu.memory_space<vmem>>, vector<4x256xbf16>,
    %14 = vector.extract_strided_slice %1 {offsets = [0, 32], sizes = [4, 256], strides = [1, 1]} : vector<4x384xbf16> to vector<4x256xbf16>
    %c24 = arith.constant 24 : index
    %c0_9 = arith.constant 0 : index
    %15 = vector.load %arg5[%c24, %c0_9] : memref<36x256xbf16, #tpu.memory_space<vmem>>, vector<4x256xbf16>
    tpu.vector_store %arg5[%c24, %c0_9], %14 {strides = array<i32>} : memref<36x256xbf16, #tpu.memory_space<vmem>>, vector<4x256xbf16>,
    %16 = vector.extract_strided_slice %1 {offsets = [0, 33], sizes = [4, 256], strides = [1, 1]} : vector<4x384xbf16> to vector<4x256xbf16>
    %c28 = arith.constant 28 : index
    %c0_10 = arith.constant 0 : index
    %17 = vector.load %arg5[%c28, %c0_10] : memref<36x256xbf16, #tpu.memory_space<vmem>>, vector<4x256xbf16>
    tpu.vector_store %arg5[%c28, %c0_10], %16 {strides = array<i32>} : memref<36x256xbf16, #tpu.memory_space<vmem>>, vector<4x256xbf16>,
    %18 = vector.extract_strided_slice %1 {offsets = [0, 34], sizes = [4, 256], strides = [1, 1]} : vector<4x384xbf16> to vector<4x256xbf16>
    %c32 = arith.constant 32 : index
    %c0_11 = arith.constant 0 : index
    %19 = vector.load %arg5[%c32, %c0_11] : memref<36x256xbf16, #tpu.memory_space<vmem>>, vector<4x256xbf16>
    tpu.vector_store %arg5[%c32, %c0_11], %18 {strides = array<i32>} : memref<36x256xbf16, #tpu.memory_space<vmem>>, vector<4x256xbf16>,
    %c0_12 = arith.constant 0 : index
    %c0_13 = arith.constant 0 : index
    %20 = vector.load %arg2[%c0_12, %c0_13] : memref<8x36xbf16, #tpu.memory_space<vmem>>, vector<8x36xbf16>
    %c0_14 = arith.constant 0 : index
    %c0_15 = arith.constant 0 : index
    %21 = vector.load %arg5[%c0_14, %c0_15] : memref<36x256xbf16, #tpu.memory_space<vmem>>, vector<36x256xbf16>
    %cst = arith.constant dense<0.000000e+00> : vector<8x256xf32>
    %22 = tpu.matmul %20, %21, %cst {dimension_numbers = #tpu.dot_dimension_numbers<[1], [0], [0], [1], [0, 0, 1, 1], [], []>} : vector<8x36xbf16>, vector<36x256xbf16>, vector<8x256xf32> -> vector<8x256xf32>
    %c0_16 = arith.constant 0 : index
    %c0_17 = arith.constant 0 : index
    %23 = vector.load %arg3[%c0_16, %c0_17] : memref<8x1xf32, #tpu.memory_space<vmem>>, vector<8x1xf32>
    %24 = vector.broadcast %23 : vector<8x1xf32> to vector<8x256xf32>
    %25 = arith.addf %22, %24 : vector<8x256xf32>
    %cst_18 = arith.constant 0.000000e+00 : f32
    %26 = vector.broadcast %cst_18 : f32 to vector<8x256xf32>
    %27 = arith.maximumf %25, %26 : vector<8x256xf32>
    %c0_19 = arith.constant 0 : index
    %c0_20 = arith.constant 0 : index
    %c0_21 = arith.constant 0 : index
    %28 = vector.load %arg4[%c0_19, %c0_20, %c0_21] : memref<1x8x256xf32, #tpu.memory_space<vmem>>, vector<1x8x256xf32>
    %29 = vector.shape_cast %28 : vector<1x8x256xf32> to vector<8x256xf32>
    %30 = vector.shape_cast %27 : vector<8x256xf32> to vector<1x8x256xf32>
    tpu.vector_store %arg4[%c0_19, %c0_20, %c0_21], %30 {strides = array<i32>} : memref<1x8x256xf32, #tpu.memory_space<vmem>>, vector<1x8x256xf32>,
    return
  }
  func.func @transform_0(%arg0: i32) -> (i32, i32, i32) {
    %c0_i32 = arith.constant 0 : i32
    %c0_i32_0 = arith.constant 0 : i32
    %c0_i32_1 = arith.constant 0 : i32
    return %arg0, %c0_i32, %c0_i32_0 : i32, i32, i32
  }
  func.func @transform_1(%arg0: i32) -> (i32, i32) {
    %c0_i32 = arith.constant 0 : i32
    %c0_i32_0 = arith.constant 0 : i32
    %c0_i32_1 = arith.constant 0 : i32
    return %c0_i32, %c0_i32_0 : i32, i32
  }
  func.func @transform_2(%arg0: i32) -> (i32, i32) {
    %c0_i32 = arith.constant 0 : i32
    %c0_i32_0 = arith.constant 0 : i32
    %c0_i32_1 = arith.constant 0 : i32
    return %c0_i32, %c0_i32_0 : i32, i32
  }
  func.func @transform_3(%arg0: i32) -> (i32, i32, i32) {
    %c0_i32 = arith.constant 0 : i32
    %c0_i32_0 = arith.constant 0 : i32
    %c0_i32_1 = arith.constant 0 : i32
    return %arg0, %c0_i32, %c0_i32_0 : i32, i32, i32
  }
}

</mosaic_0001>

<llo_original>
// kernel: basic_conv.1
$region0: #{basic_conv.1}
  #allocation0 [shape = 'u32[]', space=smem, size = 0x4, offset = 0x4, fixed_abs, tag = 'smem constant byte address 0x4 - core index']
  #allocation1 [shape = 'u32[144,128]{1,0:T(1,128)}', space=vmem, size = 0x12000, scoped, tag = 'internal scratch']
  #allocation2 [shape = 'bf16[36,256]{1,0:T(8,128)(2,1)}', space=vmem, size = 0x5000, scoped, tag = 'scratch operand']
  %s0 = inlined_call_operand.vmem [shape: bf16[2,4,384], index: 0, kind: input, shape index: {}]
  %s1 = inlined_call_operand.vmem [shape: bf16[8,36], index: 1, kind: input, shape index: {}]
  %s2 = inlined_call_operand.vmem [shape: f32[8,1], index: 2, kind: input, shape index: {}]
  %s3 = inlined_call_operand.vmem [shape: f32[2,8,256], index: 3, kind: output, shape index: {}]
  %s4 = sld [smem:[#allocation0]]
  $region45: #{basic_conv.1} parent=0
    _
  %s6 = ssub.s32 1, %s4
  %s7 = scalar_select 0, %s6, %s4
  loop: start=0, step=1, limit=4
  $region2: #{basic_conv.1} parent=0 // loop_pre_header
    _
  $region3: #{basic_conv.1} parent=0 // loop_header
    %s9 = sphi 0, %s13
    %p10 = scmp.ge.s32.totalorder %s9, 4
    %s19 = sphi 0, %s21
    %s22 = sphi 0, %s19
    %s23 = sphi 0, %s22
    %s39 = sphi 0, %s23
    %s43 = sphi 0, %s43
    %s45 = sphi 0, %s43
    %s46 = sphi 0, %s45
    %s60 = sphi 0, %s46
    %s64 = sphi 0, %s64
    %s66 = sphi 0, %s64
    %s67 = sphi 0, %s66
    %s81 = sphi 0, %s67
    %s87 = sphi 0, %s89
    %s90 = sphi 0, %s87
    %s91 = sphi 0, %s90
    %s107 = sphi 0, %s91
  $region4: #{basic_conv.1} parent=0 // loop_header_branch
    %12 = sbr.rel (%p10) target = $region8
  $region5: #{basic_conv.1} parent=0 // loop_body
    %s14 = ssub.s32 %s9, 1
    %s15 = ssub.s32 %s9, 2
    %s16 = sadd.s32 %s9, 1
    %s17 = ssub.s32 %s9, %s16
    %p18 = scmp.eq.s32.totalorder %s17, 0
    %s20 = sadd.s32 %s19, 1
    %s21 = scalar_select %p18, %s19, %s20
    %p24 = pneg %p18
    %p25 = scmp.eq.s32.totalorder %s9, 1
    %p26 = por %p24, %p25
    %p27 = scmp.ne.s32.totalorder %s19, %s22
    %p28 = scmp.eq.s32.totalorder %s9, 0
    %p29 = por %p27, %p28
    %p30 = scmp.ne.s32.totalorder %s19, %s22
    %p31 = scmp.eq.s32.totalorder %s14, 1
    %p32 = por %p30, %p31
    %p33 = scmp.ne.s32.totalorder %s22, %s23
    %p34 = scmp.eq.s32.totalorder %s14, 0
    %p35 = por %p33, %p34
    %p36 = scmp.ne.s32.totalorder %s22, %s23
    %p37 = scmp.eq.s32.totalorder %s15, 1
    %p38 = por %p36, %p37
    %p40 = scmp.ne.s32.totalorder %s23, %s39
    %p41 = scmp.eq.s32.totalorder %s15, 0
    %p42 = por %p40, %p41
    %s44 = sadd.s32 %s43, 1
    %p47 = scmp.eq.s32.totalorder %s9, 1
    %p48 = scmp.ne.s32.totalorder %s43, %s45
    %p49 = scmp.eq.s32.totalorder %s9, 0
    %p50 = por %p48, %p49
    %p51 = scmp.ne.s32.totalorder %s43, %s45
    %p52 = scmp.eq.s32.totalorder %s14, 1
    %p53 = por %p51, %p52
    %p54 = scmp.ne.s32.totalorder %s45, %s46
    %p55 = scmp.eq.s32.totalorder %s14, 0
    %p56 = por %p54, %p55
    %p57 = scmp.ne.s32.totalorder %s45, %s46
    %p58 = scmp.eq.s32.totalorder %s15, 1
    %p59 = por %p57, %p58
    %p61 = scmp.ne.s32.totalorder %s46, %s60
    %p62 = scmp.eq.s32.totalorder %s15, 0
    %p63 = por %p61, %p62
    %s65 = sadd.s32 %s64, 1
    %p68 = scmp.eq.s32.totalorder %s9, 1
    %p69 = scmp.ne.s32.totalorder %s64, %s66
    %p70 = scmp.eq.s32.totalorder %s9, 0
    %p71 = por %p69, %p70
    %p72 = scmp.ne.s32.totalorder %s64, %s66
    %p73 = scmp.eq.s32.totalorder %s14, 1
    %p74 = por %p72, %p73
    %p75 = scmp.ne.s32.totalorder %s66, %s67
    %p76 = scmp.eq.s32.totalorder %s14, 0
    %p77 = por %p75, %p76
    %p78 = scmp.ne.s32.totalorder %s66, %s67
    %p79 = scmp.eq.s32.totalorder %s15, 1
    %p80 = por %p78, %p79
    %p82 = scmp.ne.s32.totalorder %s67, %s81
    %p83 = scmp.eq.s32.totalorder %s15, 0
    %p84 = por %p82, %p83
    %s85 = ssub.s32 %s9, %s16
    %p86 = scmp.eq.s32.totalorder %s85, 0
    %s88 = sadd.s32 %s87, 1
    %s89 = scalar_select %p86, %s87, %s88
    %p92 = pneg %p86
    %p93 = scmp.eq.s32.totalorder %s9, 1
    %p94 = por %p92, %p93
    %p95 = scmp.ne.s32.totalorder %s87, %s90
    %p96 = scmp.eq.s32.totalorder %s9, 0
    %p97 = por %p95, %p96
    %p98 = scmp.ne.s32.totalorder %s87, %s90
    %p99 = scmp.eq.s32.totalorder %s14, 1
    %p100 = por %p98, %p99
    %p101 = scmp.ne.s32.totalorder %s90, %s91
    %p102 = scmp.eq.s32.totalorder %s14, 0
    %p103 = por %p101, %p102
    %p104 = scmp.ne.s32.totalorder %s90, %s91
    %p105 = scmp.eq.s32.totalorder %s15, 1
    %p106 = por %p104, %p105
    %p108 = scmp.ne.s32.totalorder %s91, %s107
    %p109 = scmp.eq.s32.totalorder %s15, 0
    %p110 = por %p108, %p109
    %p111 = scmp.le.s32.totalorder 1, %s9
    %p112 = scmp.lt.s32.totalorder %s9, 3
    %p113 = pnand %p111, %p112
    %p114 = pneg %p113
    // Predicated region
    $region9: #{basic_conv.1} parent=5 // pred_check
      _
    $region10: #{basic_conv.1} parent=5 // pred_check_branch
      %116 = sbr.rel (%p113) target = $region12
    $region11: #{basic_conv.1} parent=5 // pred_region
      %s117 = ssub.s32 %s9, 1
      // Predicated region
      $region13: #{basic_conv.1} parent=11 // pred_check
        %p118 = pneg %p56
      $region14: #{basic_conv.1} parent=11 // pred_check_branch
        %120 = sbr.rel (%p118) target = $region16
      $region15: #{basic_conv.1} parent=11 // pred_region
        _
      $region16: #{basic_conv.1} parent=11 // pred_fallthru
        _
      // Predicated region
      $region17: #{basic_conv.1} parent=11 // pred_check
        %p121 = pneg %p77
      $region18: #{basic_conv.1} parent=11 // pred_check_branch
        %123 = sbr.rel (%p121) target = $region20
      $region19: #{basic_conv.1} parent=11 // pred_region
        _
      $region20: #{basic_conv.1} parent=11 // pred_fallthru
        _
    $region12: #{basic_conv.1} parent=5 // pred_fallthru
      _
    %p124 = scmp.lt.s32.totalorder %s9, 2
    // Predicated region
    $region21: #{basic_conv.1} parent=5 // pred_check
      %p125 = pneg %p124
    $region22: #{basic_conv.1} parent=5 // pred_check_branch
      %127 = sbr.rel (%p125) target = $region24
    $region23: #{basic_conv.1} parent=5 // pred_region
      // Predicated region
      $region25: #{basic_conv.1} parent=23 // pred_check
        %p128 = pneg %p29
      $region26: #{basic_conv.1} parent=23 // pred_check_branch
        %130 = sbr.rel (%p128) target = $region28
      $region27: #{basic_conv.1} parent=23 // pred_region
        %p131 = scmp.lt.s32.totalorder %s9, 1
        %s132 = scalar_select %p131, %s9, 1
        %s133 = smul.addr %s132, 3
        %s134 = smul.addr %s133, 2
        %s135 = scalar_lea.vmem %s0, %s134
      $region28: #{basic_conv.1} parent=23 // pred_fallthru
        _
    $region24: #{basic_conv.1} parent=5 // pred_fallthru
      _
    %p136 = scmp.le.s32.totalorder 1, %s9
    %p137 = scmp.lt.s32.totalorder %s9, 3
    %p138 = pnand %p136, %p137
    %p139 = pneg %p138
    // Predicated region
    $region29: #{basic_conv.1} parent=5 // pred_check
      _
    $region30: #{basic_conv.1} parent=5 // pred_check_branch
      %141 = sbr.rel (%p138) target = $region32
    $region31: #{basic_conv.1} parent=5 // pred_region
      %s142 = ssub.s32 %s9, 1
      %p143 = scmp.lt.s32.totalorder %s14, 1
      %s144 = scalar_select %p143, %s14, 1
      %s145 = smul.addr %s144, 3
      %s146 = smul.addr %s145, 2
      %s147 = scalar_lea.vmem %s0, %s146
      %p148 = pneg %p35
      %p149 = pneg %p32
      %p150 = pneg %p56
      %p151 = pneg %p53
      %p152 = pneg %p77
      %p153 = pneg %p74
      %p154 = pneg %p103
      %p155 = pneg %p100
      %p156 = scmp.lt.s32.totalorder %s14, 1
      %s157 = scalar_select %p156, %s14, 1
      %s158 = smul.addr %s157, 2
      %s159 = smul.addr %s158, 8
      %s160 = scalar_lea.vmem %s3, %s159
      %p161 = scmp.lt.s32.totalorder %s14, 1
      %s162 = scalar_select %p161, %s14, 1
      %s163 = smul.addr %s162, 3
      %s164 = smul.addr %s163, 2
      %s165 = scalar_lea.vmem %s0, %s164
      %p166 = scmp.lt.s32.totalorder %s14, 1
      %s167 = scalar_select %p166, %s14, 1
      %s168 = smul.addr %s167, 2
      %s169 = smul.addr %s168, 8
      %s170 = scalar_lea.vmem %s3, %s169
      %v172 = vld [vmem:[%s165] sm:$0x3f]
      %v175 = vunpack.c.l.s4 1983009808
      %v176 = vunpack.c.0.s8 %v175
      %v177 = vlaneseq
      %v178 = vshrl.u32 %v177, 7
      %v179 = vsub.s32 %v176, %v178
      %v180 = vrot.slane %v172, %v179
      %182 = vst [vmem:[#allocation2] sm:$0x33] %v180
      %v183 = vcombine.low %v172, %v172
      %v185 = vunpack.c.l.s4 1983009808
      %v186 = vunpack.c.0.s8 %v185
      %v187 = vlaneseq
      %v188 = vshrl.u32 %v187, 7
      %v189 = vsub.s32 %v186, %v188
      %v190 = vrot.slane %v183, %v189
      %191 = vrot.lane.b32.xlu0 %v190, 127
      %v192 = vpop.permute.xlu0 %191
      %193 = vrot.lane.b32.xlu0 %v180, 127
      %v194 = vpop.permute.xlu0 %193
      %v195 = vrot.slane %v192, 4
      %v196 = vrot.slane %v194, 4
      %vm197 = vcmask 1043456
      %v198 = vsel %vm197, %v195, %v196
      %vm199 = vcmask 1039360
      %v200 = vsel %vm199, %v192, %v198
      %202 = vst [vmem:[#allocation2] sm:$0xcc] %v200
      %v203 = vcombine.high %v172, %v172
      %v205 = vunpack.c.l.s4 1983009808
      %v206 = vunpack.c.0.s8 %v205
      %v207 = vlaneseq
      %v208 = vshrl.u32 %v207, 7
      %v209 = vsub.s32 %v206, %v208
      %v210 = vrot.slane %v203, %v209
      %211 = vrot.lane.b32.xlu0 %v180, 126
      %v212 = vpop.permute.xlu0 %211
      %213 = vrot.lane.b32.xlu0 %v210, 126
      %v214 = vpop.permute.xlu0 %213
      %v215 = vrot.slane %v212, 4
      %v216 = vrot.slane %v214, 4
      %v217 = vsel %vm197, %v215, %v216
      %vm218 = vcmask 1031168
      %v219 = vsel %vm218, %v212, %v217
      %221 = vst [vmem:[#allocation2 + $0x8] sm:$0x33] %v219
      %222 = vrot.lane.b32.xlu0 %v190, 112
      %v223 = vpop.permute.xlu0 %222
      %224 = vrot.lane.b32.xlu0 %v180, 112
      %v225 = vpop.permute.xlu0 %224
      %v226 = vrot.slane %v223, 4
      %v227 = vrot.slane %v225, 4
      %v228 = vsel %vm197, %v226, %v227
      %vm229 = vcmask 916480
      %v230 = vsel %vm229, %v223, %v228
      %232 = vst [vmem:[#allocation2 + $0x8] sm:$0xcc] %v230
      %233 = vrot.lane.b32.xlu0 %v180, 111
      %v234 = vpop.permute.xlu0 %233
      %235 = vrot.lane.b32.xlu0 %v210, 111
      %v236 = vpop.permute.xlu0 %235
      %v237 = vrot.slane %v234, 4
      %v238 = vrot.slane %v236, 4
      %v239 = vsel %vm197, %v237, %v238
      %vm240 = vcmask 908288
      %v241 = vsel %vm240, %v234, %v239
      %243 = vst [vmem:[#allocation2 + $0x10] sm:$0x33] %v241
      %244 = vrot.lane.b32.xlu0 %v190, 110
      %v245 = vpop.permute.xlu0 %244
      %246 = vrot.lane.b32.xlu0 %v180, 110
      %v247 = vpop.permute.xlu0 %246
      %v248 = vrot.slane %v245, 4
      %v249 = vrot.slane %v247, 4
      %v250 = vsel %vm197, %v248, %v249
      %vm251 = vcmask 900096
      %v252 = vsel %vm251, %v245, %v250
      %254 = vst [vmem:[#allocation2 + $0x10] sm:$0xcc] %v252
      %255 = vrot.lane.b32.xlu0 %v180, 96
      %v256 = vpop.permute.xlu0 %255
      %257 = vrot.lane.b32.xlu0 %v210, 96
      %v258 = vpop.permute.xlu0 %257
      %v259 = vrot.slane %v256, 4
      %v260 = vrot.slane %v258, 4
      %v261 = vsel %vm197, %v259, %v260
      %vm262 = vcmask 785408
      %v263 = vsel %vm262, %v256, %v261
      %265 = vst [vmem:[#allocation2 + $0x18] sm:$0x33] %v263
      %266 = vrot.lane.b32.xlu0 %v190, 95
      %v267 = vpop.permute.xlu0 %266
      %268 = vrot.lane.b32.xlu0 %v180, 95
      %v269 = vpop.permute.xlu0 %268
      %v270 = vrot.slane %v267, 4
      %v271 = vrot.slane %v269, 4
      %v272 = vsel %vm197, %v270, %v271
      %vm273 = vcmask 777216
      %v274 = vsel %vm273, %v267, %v272
      %276 = vst [vmem:[#allocation2 + $0x18] sm:$0xcc] %v274
      %277 = vrot.lane.b32.xlu0 %v180, 94
      %v278 = vpop.permute.xlu0 %277
      %279 = vrot.lane.b32.xlu0 %v210, 94
      %v280 = vpop.permute.xlu0 %279
      %v281 = vrot.slane %v278, 4
      %v282 = vrot.slane %v280, 4
      %v283 = vsel %vm197, %v281, %v282
      %vm284 = vcmask 769024
      %v285 = vsel %vm284, %v278, %v283
      %287 = vst [vmem:[#allocation2 + $0x20] sm:$0x33] %v285
      %v288 = vld [vmem:[%s1] sm:$0xf]
      %v289 = vld [vmem:[#allocation2] sm:$0xff]
      %v290 = vld [vmem:[#allocation2 + $0x8] sm:$0xff]
      %v291 = vld [vmem:[#allocation2 + $0x10] sm:$0xff]
      %v292 = vld [vmem:[#allocation2 + $0x18] sm:$0xff]
      %v293 = vld [vmem:[#allocation2 + $0x20] sm:$0x33]
      %v294 = vld [vmem:[%s2] sm:$0xff]
      %296 = vset.pattern.permute.xlu0 0
      %297 = vperm.xlu0 %296, %v294
      %v298 = vpop.permute.xlu0 %297
      %v305 = vunpack.c.l.b16 %v289
      %v306 = vunpack.c.h.b16 %v289
      %v307 = vunpack.c.l.b16 %v290
      %v308 = vunpack.c.h.b16 %v290
      %v309 = vunpack.c.l.b16 %v291
      %v310 = vunpack.c.h.b16 %v291
      %v311 = vunpack.c.l.b16 %v292
      %v312 = vunpack.c.h.b16 %v292
      %v313 = vunpack.c.l.b16 %v293
      %v314 = vunpack.c.h.b16 %v293
      %v315 = vpack.c.b16 %v307, %v305
      %v316 = vpack.c.b16 %v308, %v306
      %v317 = vpack.c.b16 %v311, %v309
      %v318 = vpack.c.b16 %v312, %v310
      %v319 = vpack.c.b16 %v313, %v313
      %v320 = vpack.c.b16 %v314, %v314
      %vm325 = vcmask 293888
      %v327 = vsel %vm325, %v288, 0
      %vm329 = vcmask 1041408
      %v331 = vsel %vm329, %v319, 0
      %v334 = vsel %vm329, %v320, 0
      %336 = vmatprep.subr.bf16.mxu0 %v316
      %337 = vmatpush1.bf16.msra.mxu0 %v315
      %338 = vmatprep.subr.bf16.mxu0 %v318
      %339 = vmatpush1.bf16.msra.mxu0 %v317
      %340 = vmatprep.subr.bf16.mxu0 %v334
      %341 = vmatpush1.bf16.msra.mxu0 %v331
      %342 = vmatprep.subr.bf16.mxu0 0
      %343 = vmatpush1.bf16.msra.mxu0 0
      %344 = vmatprep.subr.bf16.mxu0 0
      %345 = vmatpush1.bf16.msra.mxu0 0
      %346 = vmatprep.subr.bf16.mxu0 0
      %347 = vmatpush1.bf16.msra.mxu0 0
      %348 = vmatprep.subr.bf16.mxu0 0
      %349 = vmatpush1.bf16.msra.mxu0 0
      %350 = vmatprep.subr.bf16.mxu0 0
      %351 = vmatpush1.bf16.msra.mxu0 0
      %352 = vmatprep.subr.bf16.mxu0 0
      %353 = vmatpush1.bf16.msra.mxu0 0
      %354 = vmatprep.subr.bf16.mxu0 0
      %355 = vmatpush1.bf16.msra.mxu0 0
      %356 = vmatprep.subr.bf16.mxu0 0
      %357 = vmatpush1.bf16.msra.mxu0 0
      %358 = vmatprep.subr.bf16.mxu0 0
      %359 = vmatpush1.bf16.msra.mxu0 0
      %360 = vmatprep.subr.bf16.mxu0 0
      %361 = vmatpush1.bf16.msra.mxu0 0
      %362 = vmatprep.subr.bf16.mxu0 0
      %363 = vmatpush1.bf16.msra.mxu0 0
      %364 = vmatprep.subr.bf16.mxu0 0
      %365 = vmatpush1.bf16.msra.mxu0 0
      %366 = vmatprep.subr.bf16.mxu0 0
      %367 = vmatpush1.bf16.msra.mxu0 0
      %368 = vmatprep.mubr.bf16.mxu0 0
      %369 = vmatmul.mubr.bf16.gmra.mrb[0].mxu0 %v327
      %v370 = vpop.f32.mrb[0].mxu0
      %v371 = vadd.f32 %v298, %v370
      %v372 = vpop.f32.mrb[0].mxu0
      %v373 = vadd.f32 %v298, %v372
      %v374 = vpop.f32.mrb[0].mxu0
      %v375 = vpop.f32.mrb[0].mxu0
      %376 = vdwg.mxu0
      %v377 = vmax.f32 %v371, 0.0
      %v378 = vmax.f32 %v373, 0.0
      %379 = vst [vmem:[%s170] sm:$0xff] %v377
      %380 = vst [vmem:[%s170 + $0x8] sm:$0xff] %v378
      %p381 = scmp.lt.s32.totalorder %s14, 1
      %s382 = scalar_select %p381, %s14, 1
      %s383 = smul.addr %s382, 2
      %s384 = smul.addr %s383, 8
      %s385 = scalar_lea.vmem %s3, %s384
      // Predicated region
      $region33: #{basic_conv.1} parent=31 // pred_check
        %p386 = pneg %p100
      $region34: #{basic_conv.1} parent=31 // pred_check_branch
        %388 = sbr.rel (%p386) target = $region36
      $region35: #{basic_conv.1} parent=31 // pred_region
        _
      $region36: #{basic_conv.1} parent=31 // pred_fallthru
        _
    $region32: #{basic_conv.1} parent=5 // pred_fallthru
      _
    %p389 = scmp.le.s32.totalorder 2, %s9
    // Predicated region
    $region37: #{basic_conv.1} parent=5 // pred_check
      %p390 = pneg %p389
    $region38: #{basic_conv.1} parent=5 // pred_check_branch
      %392 = sbr.rel (%p390) target = $region40
    $region39: #{basic_conv.1} parent=5 // pred_region
      %s393 = ssub.s32 %s9, 2
      // Predicated region
      $region41: #{basic_conv.1} parent=39 // pred_check
        %p394 = pneg %p106
      $region42: #{basic_conv.1} parent=39 // pred_check_branch
        %396 = sbr.rel (%p394) target = $region44
      $region43: #{basic_conv.1} parent=39 // pred_region
        %p397 = scmp.lt.s32.totalorder %s15, 1
        %s398 = scalar_select %p397, %s15, 1
        %s399 = smul.addr %s398, 2
        %s400 = smul.addr %s399, 8
        %s401 = scalar_lea.vmem %s3, %s400
      $region44: #{basic_conv.1} parent=39 // pred_fallthru
        _
    $region40: #{basic_conv.1} parent=5 // pred_fallthru
      _
  $region6: #{basic_conv.1} parent=0 // loop_footer
    %s13 = sadd.s32 1, %s9
  $region7: #{basic_conv.1} parent=0 // loop_footer_branch
    %8 = sbr.rel target = $region3
  $region8: #{basic_conv.1} parent=0 // loop_exit
    _

</llo_original>
